<compile_context>
chip_gen: v5e
topology: v5e:2x2
jax: 0.10.0
libtpu: 0.0.40
codegen_flags: <defaults>
</compile_context>

<pallas_src>
import functools

import jax
import jax.numpy as jnp
from jax.experimental import pallas as pl
from jax.experimental.pallas import tpu as pltpu


def _cdiv(a, b):
    return -(-a // b)


def _vmem_capacity_bytes():
    """Per-core VMEM capacity; conservative (v7x) fallback if query fails."""
    try:
        cap = getattr(pltpu.get_tpu_info(), "vmem_capacity_bytes", None)
        if cap:
            return int(cap)
    except Exception:
        pass
    return 64 * 1024 * 1024


def _fm_kernel_aligned(x_ref, o_ref, *, num_fields, embed_dim, reduce_sum):
    """E % 128 == 0: per-field slices are lane-aligned (full vreg width)."""
    # Single pass over fields: accumulate sum and sum-of-squares together.
    # (For very large F this could switch to a bounded-unroll fori_loop, but
    #  typical FM field counts are <= 16.)
    xf = x_ref[:, 0:embed_dim].astype(jnp.float32)
    acc_s = xf
    acc_sq = xf * xf
    for f in range(1, num_fields):
        xf = x_ref[:, f * embed_dim:(f + 1) * embed_dim].astype(jnp.float32)
        acc_s = acc_s + xf
        acc_sq = acc_sq + xf * xf
    ix = acc_s * acc_s - acc_sq  # (TB, E), f32
    if reduce_sum:
        o_ref[...] = (0.5 * jnp.sum(ix, axis=1, keepdims=True)).astype(o_ref.dtype)
    else:
        o_ref[...] = (0.5 * ix).astype(o_ref.dtype)


def _fm_kernel_mxu(x_ref, k_ref, o_ref, *, reduce_sum):
    """E % 128 != 0: full-lane-width VPU work + field reduction on the MXU.

    x_ref: (TB, F*E) block; k_ref: (F*E, E) 0/1 field-summing matrix
    (I_E stacked F times); o_ref: (TB, 1) or (TB, E) block.
    """
    xf = x_ref[...].astype(jnp.float32)        # (TB, F*E), full lane width
    xsq = xf * xf                              # full lane width
    k = k_ref[...]                             # (F*E, E)
    # sum over fields for every embed position: (TB, E) -- MXU is idle here.
    s = jnp.dot(xf, k, preferred_element_type=jnp.float32)
    if reduce_sum:
        # sum_e sum_f x^2 needs no per-field structure: one full-width reduce.
        sum_sq = jnp.sum(xsq, axis=1, keepdims=True)        # (TB, 1)
        sq_of_sum = jnp.sum(s * s, axis=1, keepdims=True)   # (TB, 1)
        o_ref[...] = (0.5 * (sq_of_sum - sum_sq)).astype(o_ref.dtype)
    else:
        sum_sq = jnp.dot(xsq, k, preferred_element_type=jnp.float32)  # (TB, E)
        o_ref[...] = (0.5 * (s * s - sum_sq)).astype(o_ref.dtype)


def factorization_machine(x, reduce_sum=True, *, block_b=None):
    """Factorization-machine pairwise interaction term.

    x: (B, F, E) array.  Returns (B, 1) if reduce_sum else (B, E), same dtype.
    """
    B, F, E = x.shape
    fe = F * E
    itemsize = jnp.dtype(x.dtype).itemsize

    # Flatten fields*embed into one lane-dense trailing dim (free reshape).
    x2 = x.reshape(B, fe)

    fe_lanes = _cdiv(fe, 128) * 128
    out_cols = 1 if reduce_sum else E
    out_lanes = _cdiv(max(out_cols, 1), 128) * 128

    # Generation-aware VMEM budgeting (v5e/v6e: 128 MiB, v7x: 64 MiB per TC).
    vmem_cap = _vmem_capacity_bytes()
    vmem_limit = int(min((vmem_cap * 3) // 4, 100 * 1024 * 1024))

    if block_b is None:
        # Per-row VMEM working set: double-buffered native-dtype input slab,
        # ~4 full-width f32 intermediates, double-buffered output block.
        row_bytes = (2 * fe_lanes * itemsize
                     + 4 * fe_lanes * 4
                     + 2 * out_lanes * itemsize)
        slab_budget = (vmem_limit * 3) // 5       # ~60%: headroom for scratch
        tb = slab_budget // max(row_bytes, 1)
        tb = max(8, min(8192, (tb // 8) * 8))
        # Keep >= 2 batch tiles whenever possible so the "parallel" axis can
        # actually shard across v7x's two TensorCores.
        half_b = max(8, _cdiv(_cdiv(B, 2), 8) * 8)
        tb = min(tb, half_b)
    else:
        tb = max(8, (block_b // 8) * 8)           # multiple of 8 sublanes
    tb = min(tb, _cdiv(B, 8) * 8)                 # no tile larger than padded batch

    b_pad = _cdiv(B, tb) * tb
    if b_pad != B:
        x2 = jnp.pad(x2, ((0, b_pad - B), (0, 0)))

    grid = (b_pad // tb,)

    if reduce_sum:
        out_shape = jax.ShapeDtypeStruct((b_pad, 1), x.dtype)
        out_spec = pl.BlockSpec((tb, 1), lambda i: (i, 0))
    else:
        out_shape = jax.ShapeDtypeStruct((b_pad, E), x.dtype)
        out_spec = pl.BlockSpec((tb, E), lambda i: (i, 0))

    aligned = (E % 128 == 0)
    if aligned:
        kernel = functools.partial(
            _fm_kernel_aligned, num_fields=F, embed_dim=E, reduce_sum=reduce_sum)
        in_specs = [pl.BlockSpec((tb, fe), lambda i: (i, 0))]
        args = (x2,)
        mxu_flops = 0
        k_bytes = 0
    else:
        kernel = functools.partial(_fm_kernel_mxu, reduce_sum=reduce_sum)
        # 0/1 field-summing matrix: K[f*E + e, e'] = 1 iff e == e'.
        col_ids = jnp.arange(fe, dtype=jnp.int32) % E
        k_mat = (col_ids[:, None] == jnp.arange(E, dtype=jnp.int32)[None, :]
                 ).astype(jnp.float32)
        in_specs = [pl.BlockSpec((tb, fe), lambda i: (i, 0)),
                    pl.BlockSpec((fe, E), lambda i: (0, 0))]  # resident block
        args = (x2, k_mat)
        n_matmuls = 1 if reduce_sum else 2
        mxu_flops = 2 * B * fe * E * n_matmuls
        k_bytes = fe * E * 4

    cost = pl.CostEstimate(
        flops=int(4 * B * F * E + mxu_flops),
        transcendentals=0,
        bytes_accessed=int(B * fe * itemsize + B * out_cols * itemsize + k_bytes),
    )

    out = pl.pallas_call(
        kernel,
        out_shape=out_shape,
        grid=grid,
        in_specs=in_specs,
        out_specs=out_spec,
        compiler_params=pltpu.CompilerParams(
            dimension_semantics=("parallel",),
            vmem_limit_bytes=vmem_limit,
        ),
        cost_estimate=cost,
    )(*args)

    return out[:B]


def _reference_fm(x, reduce_sum=True):
    square_of_sum = jnp.sum(x, axis=1) ** 2
    sum_of_square = jnp.sum(x ** 2, axis=1)
    ix = square_of_sum - sum_of_square
    if reduce_sum:
        ix = jnp.sum(ix, axis=1, keepdims=True)
    return 0.5 * ix


if __name__ == "__main__":
    key = jax.random.PRNGKey(0)

    # Small shape matching the module convention (batch, num_fields, embed_dim).
    # E=32 exercises the full-lane-width MXU path (E % 128 != 0).
    B, F, E = 2, 4, 32
    x = jax.random.normal(key, (B, F, E), dtype=jnp.float32)

    out = jax.block_until_ready(factorization_machine(x, reduce_sum=True))
    ref = _reference_fm(x, reduce_sum=True)
    assert out.shape == (B, 1), out.shape
    assert jnp.allclose(out, ref, atol=1e-5, rtol=1e-5)

    out2 = jax.block_until_ready(factorization_machine(x, reduce_sum=False))
    ref2 = _reference_fm(x, reduce_sum=False)
    assert out2.shape == (B, E), out2.shape
    assert jnp.allclose(out2, ref2, atol=1e-5, rtol=1e-5)

    # Multi-tile / padded-batch path (grid > 1, B not tile-aligned), MXU path.
    B2 = 1030
    x_big = jax.random.normal(jax.random.PRNGKey(1), (B2, F, E), dtype=jnp.float32)
    out3 = jax.block_until_ready(
        factorization_machine(x_big, reduce_sum=True, block_b=512))
    ref3 = _reference_fm(x_big, reduce_sum=True)
    assert out3.shape == (B2, 1), out3.shape
    assert jnp.allclose(out3, ref3, atol=1e-4, rtol=1e-4)

    # Lane-aligned path (E % 128 == 0) with auto tile selection + padding.
    B3, F3, E3 = 20, 3, 128
    x_al = jax.random.normal(jax.random.PRNGKey(2), (B3, F3, E3), dtype=jnp.float32)
    out4 = jax.block_until_ready(factorization_machine(x_al, reduce_sum=True))
    ref4 = _reference_fm(x_al, reduce_sum=True)
    assert out4.shape == (B3, 1), out4.shape
    assert jnp.allclose(out4, ref4, atol=1e-4, rtol=1e-4)

    out5 = jax.block_until_ready(factorization_machine(x_al, reduce_sum=False))
    ref5 = _reference_fm(x_al, reduce_sum=False)
    assert out5.shape == (B3, E3), out5.shape
    assert jnp.allclose(out5, ref5, atol=1e-4, rtol=1e-4)

    print("KERNEL_OK")
</pallas_src>

<mosaic_0001>
module attributes {stable_mosaic.version = 11 : i64} {
  func.func @_fm_kernel_mxu(%arg0: i32, %arg1: memref<8x128xf32, #tpu.memory_space<vmem>>, %arg2: memref<128x32xf32, #tpu.memory_space<vmem>>, %arg3: memref<8x1xf32, #tpu.memory_space<vmem>>) attributes {dimension_semantics = [#tpu.dimension_semantics<parallel>], iteration_bounds = array<i64: 1>, scalar_prefetch = 0 : i64, scratch_operands = 0 : i64, tpu.core_type = #tpu.core_type<tc>, window_params = [{transform_indices = @transform_0, window_bounds = array<i64: 8, 128>}, {pipeline_mode = #tpu.pipeline_mode<synchronous>, transform_indices = @transform_1, window_bounds = array<i64: 128, 32>}, {transform_indices = @transform_2, window_bounds = array<i64: 8, 1>}]} {
    %c0 = arith.constant 0 : index
    %c0_0 = arith.constant 0 : index
    %0 = vector.load %arg1[%c0, %c0_0] : memref<8x128xf32, #tpu.memory_space<vmem>>, vector<8x128xf32>
    %1 = arith.mulf %0, %0 : vector<8x128xf32>
    %c0_1 = arith.constant 0 : index
    %c0_2 = arith.constant 0 : index
    %2 = vector.load %arg2[%c0_1, %c0_2] : memref<128x32xf32, #tpu.memory_space<vmem>>, vector<128x32xf32>
    %cst = arith.constant dense<0.000000e+00> : vector<8x32xf32>
    %3 = tpu.matmul %0, %2, %cst {dimension_numbers = #tpu.dot_dimension_numbers<[1], [0], [0], [1], [0, 0, 1, 1], [], []>} : vector<8x128xf32>, vector<128x32xf32>, vector<8x32xf32> -> vector<8x32xf32>
    %cst_3 = arith.constant dense<0.000000e+00> : vector<8xf32>
    %4 = vector.multi_reduction <add>, %1, %cst_3 [1] : vector<8x128xf32> to vector<8xf32>
    %5 = vector.shape_cast %4 : vector<8xf32> to vector<8x1xf32>
    %6 = arith.mulf %3, %3 : vector<8x32xf32>
    %cst_4 = arith.constant dense<0.000000e+00> : vector<8xf32>
    %7 = vector.multi_reduction <add>, %6, %cst_4 [1] : vector<8x32xf32> to vector<8xf32>
    %8 = vector.shape_cast %7 : vector<8xf32> to vector<8x1xf32>
    %9 = arith.subf %8, %5 : vector<8x1xf32>
    %cst_5 = arith.constant 5.000000e-01 : f32
    %10 = vector.broadcast %cst_5 : f32 to vector<8x1xf32>
    %11 = arith.mulf %10, %9 : vector<8x1xf32>
    %c0_6 = arith.constant 0 : index
    %c0_7 = arith.constant 0 : index
    %12 = vector.load %arg3[%c0_6, %c0_7] : memref<8x1xf32, #tpu.memory_space<vmem>>, vector<8x1xf32>
    tpu.vector_store %arg3[%c0_6, %c0_7], %11 {strides = array<i32>} : memref<8x1xf32, #tpu.memory_space<vmem>>, vector<8x1xf32>,
    return
  }
  func.func @transform_0(%arg0: i32) -> (i32, i32) {
    %c0_i32 = arith.constant 0 : i32
    %c0_i32_0 = arith.constant 0 : i32
    return %arg0, %c0_i32 : i32, i32
  }
  func.func @transform_1(%arg0: i32) -> (i32, i32) {
    %c0_i32 = arith.constant 0 : i32
    %c0_i32_0 = arith.constant 0 : i32
    %c0_i32_1 = arith.constant 0 : i32
    return %c0_i32, %c0_i32_0 : i32, i32
  }
  func.func @transform_2(%arg0: i32) -> (i32, i32) {
    %c0_i32 = arith.constant 0 : i32
    %c0_i32_0 = arith.constant 0 : i32
    return %arg0, %c0_i32 : i32, i32
  }
}

</mosaic_0001>

<llo_original>
// kernel: tpu_custom_call.1
$region0: #{tpu_custom_call.1}
  #allocation0 [shape = 'u32[]', space=smem, size = 0x4, offset = 0x4, fixed_abs, tag = 'smem constant byte address 0x4 - core index']
  #allocation1 [shape = 'u32[72,128]{1,0:T(1,128)}', space=vmem, size = 0x9000, scoped, tag = 'internal scratch']
  %s0 = inlined_call_operand.vmem [shape: f32[8,128], index: 0, kind: input, shape index: {}]
  %s1 = inlined_call_operand.vmem [shape: f32[128,32], index: 1, kind: input, shape index: {}]
  %s2 = inlined_call_operand.vmem [shape: f32[8,1], index: 2, kind: output, shape index: {}]
  %s3 = sld [smem:[#allocation0]]
  $region18: #{tpu_custom_call.1} parent=0
    _
  %s5 = ssub.s32 1, %s3
  %s6 = scalar_select 0, %s5, %s3
  // Predicated region
  $region2: #{tpu_custom_call.1} parent=0 // pred_check
    _
  $region3: #{tpu_custom_call.1} parent=0 // pred_check_branch
    %8 = sbr.rel (0) target = $region5
  $region4: #{tpu_custom_call.1} parent=0 // pred_region
    _
  $region5: #{tpu_custom_call.1} parent=0 // pred_fallthru
    _
  // Predicated region
  $region6: #{tpu_custom_call.1} parent=0 // pred_check
    _
  $region7: #{tpu_custom_call.1} parent=0 // pred_check_branch
    %10 = sbr.rel (0) target = $region9
  $region8: #{tpu_custom_call.1} parent=0 // pred_region
    _
  $region9: #{tpu_custom_call.1} parent=0 // pred_fallthru
    _
  %v11 = vld [vmem:[%s0] sm:$0xff]
  %v12 = vmul.f32 %v11, %v11
  %v13 = vld [vmem:[%s1] sm:$0xff]
  %v14 = vld [vmem:[%s1 + $0x8] sm:$0xff]
  %v15 = vld [vmem:[%s1 + $0x10] sm:$0xff]
  %v16 = vld [vmem:[%s1 + $0x18] sm:$0xff]
  %v17 = vld [vmem:[%s1 + $0x20] sm:$0xff]
  %v18 = vld [vmem:[%s1 + $0x28] sm:$0xff]
  %v19 = vld [vmem:[%s1 + $0x30] sm:$0xff]
  %v20 = vld [vmem:[%s1 + $0x38] sm:$0xff]
  %v21 = vld [vmem:[%s1 + $0x40] sm:$0xff]
  %v22 = vld [vmem:[%s1 + $0x48] sm:$0xff]
  %v23 = vld [vmem:[%s1 + $0x50] sm:$0xff]
  %v24 = vld [vmem:[%s1 + $0x58] sm:$0xff]
  %v25 = vld [vmem:[%s1 + $0x60] sm:$0xff]
  %v26 = vld [vmem:[%s1 + $0x68] sm:$0xff]
  %v27 = vld [vmem:[%s1 + $0x70] sm:$0xff]
  %v28 = vld [vmem:[%s1 + $0x78] sm:$0xff]
  %29 = vmatpush.msra.mxu0 %v28
  %30 = vmatpush.msra.mxu0 %v27
  %31 = vmatpush.msra.mxu0 %v26
  %32 = vmatpush.msra.mxu0 %v25
  %33 = vmatpush.msra.mxu0 %v24
  %34 = vmatpush.msra.mxu0 %v23
  %35 = vmatpush.msra.mxu0 %v22
  %36 = vmatpush.msra.mxu0 %v21
  %37 = vmatpush.msra.mxu0 %v20
  %38 = vmatpush.msra.mxu0 %v19
  %39 = vmatpush.msra.mxu0 %v18
  %40 = vmatpush.msra.mxu0 %v17
  %41 = vmatpush.msra.mxu0 %v16
  %42 = vmatpush.msra.mxu0 %v15
  %43 = vmatpush.msra.mxu0 %v14
  %44 = vmatpush.msra.mxu0 %v13
  %45 = vmatmul.f32.gmra.mxu0 %v11
  %v46 = vpop.f32.mrf.mxu0
  %v47 = vadd.f32 0.0, %v46
  %48 = vdwg.mxu0
  %49 = vadd.xlane.f32.xlu0 %v12
  %v50 = vpop.xlane.xlu0 %49
  %v51 = vmul.f32 %v47, %v47
  %vm52 = vcmask 261120
  %v53 = vsel %vm52, %v51, 0.0
  %54 = vadd.xlane.f32.xlu0 %v53
  %v55 = vpop.xlane.xlu0 %54
  %v56 = vsub.f32 %v55, %v50
  %v57 = vmul.f32 %v56, 0.5
  %vm58 = vcmask 7168
  %59 = vst.msk [vmem:[%s2] sm:$0xff] %vm58, %v57
  // Predicated region
  $region10: #{tpu_custom_call.1} parent=0 // pred_check
    _
  $region11: #{tpu_custom_call.1} parent=0 // pred_check_branch
    %61 = sbr.rel (0) target = $region13
  $region12: #{tpu_custom_call.1} parent=0 // pred_region
    _
  $region13: #{tpu_custom_call.1} parent=0 // pred_fallthru
    _
  // Predicated region
  $region14: #{tpu_custom_call.1} parent=0 // pred_check
    _
  $region15: #{tpu_custom_call.1} parent=0 // pred_check_branch
    %63 = sbr.rel (0) target = $region17
  $region16: #{tpu_custom_call.1} parent=0 // pred_region
    _
  $region17: #{tpu_custom_call.1} parent=0 // pred_fallthru
    _

</llo_original>
